<compile_context>
chip_gen: v5e
topology: v5e:2x2
jax: 0.10.0
libtpu: 0.0.40
codegen_flags: <defaults>
</compile_context>

<pallas_src>
import functools

import jax
import jax.numpy as jnp
from jax.experimental import pallas as pl
from jax.experimental.pallas import tpu as pltpu

EPS = 1e-5
_VMEM_LIMIT_BYTES = 32 * 1024 * 1024      # explicit scoped-VMEM limit, all gens
_VMEM_BLOCK_BUDGET = 12 * 1024 * 1024     # target for double-buffered x/y blocks


def _choose_tpix(hw, cin, c4, x_bytes, max_pixels_per_tile):
    """Pixel-tile width: biggest lane-dense tile that fits the VMEM budget."""
    per_pix = 2 * (max(cin, 8) * x_bytes + max(c4, 8) * 4)   # 2x = double buffer
    cap = max(128, _VMEM_BLOCK_BUDGET // per_pix)
    cap = min(cap, max(128, max_pixels_per_tile))
    if hw <= cap:
        return hw                       # single pixel tile (full-dim block: any width legal)
    return (cap // 128) * 128           # multiple of 128 -> lane-dense; ragged edge handled


def _stats_kernel(x_ref, w_ref, b_ref, sum_ref, m2_ref, *,
                  n_pt, tpix, last_count, ragged):
    """Pass 1: conv + bias + ReLU on one pixel tile; emit per-tile sum and
    tile-centered sum-of-squares (merged across tiles in the wrapper)."""
    h = jnp.maximum(
        jnp.dot(w_ref[...], x_ref[0], preferred_element_type=jnp.float32)
        + b_ref[...],
        0.0,
    )                                                          # (C4, tpix) f32

    def write(s, m2):
        sum_ref[...] = s.reshape(1, 1, *s.shape)
        m2_ref[...] = m2.reshape(1, 1, *m2.shape)

    def full_tile():
        s = jnp.sum(h, axis=1, keepdims=True)                  # (C4, 1)
        d = h - s * (1.0 / tpix)
        write(s, jnp.sum(d * d, axis=1, keepdims=True))

    if not ragged:
        full_tile()
    else:
        p = pl.program_id(1)

        @pl.when(p != n_pt - 1)
        def _():
            full_tile()

        @pl.when(p == n_pt - 1)
        def _():
            # Mask the out-of-bounds pixels of the ragged last tile.
            col = jax.lax.broadcasted_iota(jnp.int32, (1, tpix), 1)
            valid = col < last_count
            hm = jnp.where(valid, h, 0.0)
            s = jnp.sum(hm, axis=1, keepdims=True)
            d = jnp.where(valid, hm - s * (1.0 / last_count), 0.0)
            write(s, jnp.sum(d * d, axis=1, keepdims=True))


def _emit_kernel(x_ref, w_ref, b_ref, scale_ref, shift_ref, out_ref):
    """Pass 2: recompute conv + bias + ReLU, apply the fused BN affine."""
    h = jnp.maximum(
        jnp.dot(w_ref[...], x_ref[0], preferred_element_type=jnp.float32)
        + b_ref[...],
        0.0,
    )
    y = h * scale_ref[...] + shift_ref[...]
    out_ref[...] = y[None].astype(out_ref.dtype)


def std_upsample(x, w, b, gamma, beta, *, compute_dtype=jnp.bfloat16,
                 max_pixels_per_tile=4096):
    """x: (N, Cin, H, W) NCHW; w: (Cin, Cout, 2, 2); b/gamma/beta: (Cout,)."""
    N, Cin, H, W = x.shape
    Cout = w.shape[1]
    C4 = 4 * Cout
    HW = H * W
    x_bytes = jnp.dtype(compute_dtype).itemsize

    tpix = _choose_tpix(HW, Cin, C4, x_bytes, max_pixels_per_tile)
    n_pt = (HW + tpix - 1) // tpix
    last_count = HW - (n_pt - 1) * tpix
    ragged = (HW % tpix) != 0

    # x is read natively from NCHW: (N, Cin, H, W) -> (N, Cin, H*W) is free.
    x3 = x.reshape(N, Cin, HW).astype(compute_dtype)

    # (Cin, Cout, kh, kw) -> (4*Cout, Cin); row r = co*4 + kh*2 + kw.
    wt = jnp.transpose(w, (1, 2, 3, 0)).reshape(C4, Cin).astype(compute_dtype)
    b4 = jnp.repeat(b.astype(jnp.float32), 4).reshape(C4, 1)

    cparams = pltpu.CompilerParams(
        dimension_semantics=("parallel", "parallel"),
        vmem_limit_bytes=_VMEM_LIMIT_BYTES)

    # ---------------- pass 1: per-tile partial BN statistics ----------------
    sum_t, m2_t = pl.pallas_call(
        functools.partial(_stats_kernel, n_pt=n_pt, tpix=tpix,
                          last_count=last_count, ragged=ragged),
        out_shape=(jax.ShapeDtypeStruct((N, n_pt, C4, 1), jnp.float32),
                   jax.ShapeDtypeStruct((N, n_pt, C4, 1), jnp.float32)),
        grid=(N, n_pt),
        in_specs=[
            pl.BlockSpec((1, Cin, tpix), lambda n, p: (n, 0, p)),
            pl.BlockSpec((C4, Cin), lambda n, p: (0, 0)),
            pl.BlockSpec((C4, 1), lambda n, p: (0, 0)),
        ],
        out_specs=(
            pl.BlockSpec((1, 1, C4, 1), lambda n, p: (n, p, 0, 0)),
            pl.BlockSpec((1, 1, C4, 1), lambda n, p: (n, p, 0, 0)),
        ),
        compiler_params=cparams,
    )(x3, wt, b4)

    # Merge per-tile (sum, centered M2) -> per-channel mean / biased var
    # (Chan's parallel-variance combine; tiny XLA op).
    counts = jnp.array([tpix] * (n_pt - 1) + [last_count], dtype=jnp.float32)
    cnt = counts[None, :, None, None]                          # (1, n_pt, 1, 1)
    sums = sum_t.reshape(N, n_pt, Cout, 4)
    m2s = m2_t.reshape(N, n_pt, Cout, 4)
    n_total = jnp.float32(4 * N * HW)
    mu = jnp.sum(sums, axis=(0, 1, 3)) / n_total               # (Cout,)
    dmean = sums / cnt - mu[None, None, :, None]
    m2 = jnp.sum(m2s, axis=(0, 1, 3)) + jnp.sum(cnt * dmean * dmean,
                                                axis=(0, 1, 3))
    var = m2 / n_total                                         # biased, as BN
    inv_std = jax.lax.rsqrt(var + EPS)
    scale = gamma.astype(jnp.float32) * inv_std
    shift = beta.astype(jnp.float32) - mu * scale
    scale4 = jnp.repeat(scale, 4).reshape(C4, 1)
    shift4 = jnp.repeat(shift, 4).reshape(C4, 1)

    # ---------------- pass 2: recompute conv + ReLU, normalize, emit --------
    out3 = pl.pallas_call(
        _emit_kernel,
        out_shape=jax.ShapeDtypeStruct((N, C4, HW), jnp.float32),
        grid=(N, n_pt),
        in_specs=[
            pl.BlockSpec((1, Cin, tpix), lambda n, p: (n, 0, p)),
            pl.BlockSpec((C4, Cin), lambda n, p: (0, 0)),
            pl.BlockSpec((C4, 1), lambda n, p: (0, 0)),
            pl.BlockSpec((C4, 1), lambda n, p: (0, 0)),
            pl.BlockSpec((C4, 1), lambda n, p: (0, 0)),
        ],
        out_specs=pl.BlockSpec((1, C4, tpix), lambda n, p: (n, 0, p)),
        compiler_params=cparams,
    )(x3, wt, b4, scale4, shift4)

    # (N, 4*Cout, H*W), rows (co, kh, kw) -> NCHW (N, Cout, 2H, 2W).
    # TODO(synk): fold this transpose into the pass-2 stores (direct NCHW
    # out_specs requires an in-kernel lane<->sublane interleave of kw).
    y = out3.reshape(N, Cout, 2, 2, H, W)
    y = jnp.transpose(y, (0, 1, 4, 2, 5, 3)).reshape(N, Cout, 2 * H, 2 * W)
    return y


def reference(x, w, b, gamma, beta):
    """Pure-JAX reference of StdUpsample.forward (training-mode BatchNorm)."""
    N, Cin, H, W = x.shape
    Cout = w.shape[1]
    t = jnp.einsum("nihw,iokl->nohkwl", x, w)          # (N, Cout, H, 2, W, 2)
    t = t.reshape(N, Cout, 2 * H, 2 * W) + b[None, :, None, None]
    t = jnp.maximum(t, 0.0)
    mean = t.mean(axis=(0, 2, 3), keepdims=True)
    var = t.var(axis=(0, 2, 3), keepdims=True)         # biased
    return (
        gamma[None, :, None, None] * (t - mean) / jnp.sqrt(var + EPS)
        + beta[None, :, None, None]
    )


if __name__ == "__main__":
    N, nin, nout, H, W = 2, 4, 8, 16, 16

    key = jax.random.PRNGKey(0)
    kx, kw, kb, kg, kbeta = jax.random.split(key, 5)

    x = jax.random.normal(kx, (N, nin, H, W), dtype=jnp.float32)
    # ConvTranspose2d weight shape: (nin, nout, 2, 2); bias: (nout,)
    w = jax.random.normal(kw, (nin, nout, 2, 2), dtype=jnp.float32) * 0.2
    b = jax.random.normal(kb, (nout,), dtype=jnp.float32) * 0.1
    gamma = 1.0 + 0.1 * jax.random.normal(kg, (nout,), dtype=jnp.float32)
    beta = 0.1 * jax.random.normal(kbeta, (nout,), dtype=jnp.float32)

    ref = reference(x, w, b, gamma, beta)

    # f32 operand path: exact-algorithm check against the f32 reference.
    out_f32 = jax.block_until_ready(
        std_upsample(x, w, b, gamma, beta, compute_dtype=jnp.float32))
    assert out_f32.shape == (N, nout, 2 * H, 2 * W)
    assert jnp.allclose(out_f32, ref, atol=1e-4, rtol=1e-4), (
        float(jnp.max(jnp.abs(out_f32 - ref))))

    # Default bf16-operand path: only the matmul inputs are quantized (stats and
    # BN math stay f32), so compare against the reference on bf16-rounded inputs
    # with a correspondingly relaxed tolerance.
    out_bf = jax.block_until_ready(std_upsample(x, w, b, gamma, beta))
    ref_bf = reference(x.astype(jnp.bfloat16).astype(jnp.float32),
                       w.astype(jnp.bfloat16).astype(jnp.float32),
                       b, gamma, beta)
    assert out_bf.shape == (N, nout, 2 * H, 2 * W)
    assert jnp.allclose(out_bf, ref_bf, atol=5e-3, rtol=5e-3), (
        float(jnp.max(jnp.abs(out_bf - ref_bf))))

    # H*W below one lane tile (120 pixels): single full-dim pixel block.
    x2 = jax.random.normal(jax.random.PRNGKey(1), (1, nin, 10, 12),
                           dtype=jnp.float32)
    out2 = jax.block_until_ready(
        std_upsample(x2, w, b, gamma, beta, compute_dtype=jnp.float32))
    ref2 = reference(x2, w, b, gamma, beta)
    assert out2.shape == (1, nout, 20, 24)
    assert jnp.allclose(out2, ref2, atol=1e-4, rtol=1e-4), (
        float(jnp.max(jnp.abs(out2 - ref2))))

    # Forced multi-tile (even split): exercises the per-tile stats merge.
    x3 = jax.random.normal(jax.random.PRNGKey(2), (1, nin, 16, 32),
                           dtype=jnp.float32)
    out3 = jax.block_until_ready(
        std_upsample(x3, w, b, gamma, beta, compute_dtype=jnp.float32,
                     max_pixels_per_tile=256))
    ref3 = reference(x3, w, b, gamma, beta)
    assert out3.shape == (1, nout, 32, 64)
    assert jnp.allclose(out3, ref3, atol=1e-4, rtol=1e-4), (
        float(jnp.max(jnp.abs(out3 - ref3))))

    # Forced multi-tile with a ragged last tile: exercises the masked stats path.
    x4 = jax.random.normal(jax.random.PRNGKey(3), (1, nin, 20, 20),
                           dtype=jnp.float32)
    out4 = jax.block_until_ready(
        std_upsample(x4, w, b, gamma, beta, compute_dtype=jnp.float32,
                     max_pixels_per_tile=256))
    ref4 = reference(x4, w, b, gamma, beta)
    assert out4.shape == (1, nout, 40, 40)
    assert jnp.allclose(out4, ref4, atol=1e-4, rtol=1e-4), (
        float(jnp.max(jnp.abs(out4 - ref4))))

    print("KERNEL_OK")
</pallas_src>

<mosaic_0001>
module attributes {stable_mosaic.version = 11 : i64} {
  func.func @_stats_kernel(%arg0: i32, %arg1: i32, %arg2: memref<1x4x256xf32, #tpu.memory_space<vmem>>, %arg3: memref<32x4xf32, #tpu.memory_space<vmem>>, %arg4: memref<32x1xf32, #tpu.memory_space<vmem>>, %arg5: memref<1x1x32x1xf32, #tpu.memory_space<vmem>>, %arg6: memref<1x1x32x1xf32, #tpu.memory_space<vmem>>) attributes {dimension_semantics = [#tpu.dimension_semantics<parallel>, #tpu.dimension_semantics<parallel>], iteration_bounds = array<i64: 2, 1>, scalar_prefetch = 0 : i64, scratch_operands = 0 : i64, tpu.core_type = #tpu.core_type<tc>, window_params = [{transform_indices = @transform_0, window_bounds = array<i64: 1, 4, 256>}, {pipeline_mode = #tpu.pipeline_mode<synchronous>, transform_indices = @transform_1, window_bounds = array<i64: 32, 4>}, {pipeline_mode = #tpu.pipeline_mode<synchronous>, transform_indices = @transform_2, window_bounds = array<i64: 32, 1>}, {transform_indices = @transform_3, window_bounds = array<i64: 1, 1, 32, 1>}, {transform_indices = @transform_4, window_bounds = array<i64: 1, 1, 32, 1>}]} {
    %c0 = arith.constant 0 : index
    %c0_0 = arith.constant 0 : index
    %0 = vector.load %arg3[%c0, %c0_0] : memref<32x4xf32, #tpu.memory_space<vmem>>, vector<32x4xf32>
    %c0_1 = arith.constant 0 : index
    %c0_2 = arith.constant 0 : index
    %c0_3 = arith.constant 0 : index
    %1 = vector.load %arg2[%c0_1, %c0_2, %c0_3] : memref<1x4x256xf32, #tpu.memory_space<vmem>>, vector<1x4x256xf32>
    %2 = vector.shape_cast %1 : vector<1x4x256xf32> to vector<4x256xf32>
    %cst = arith.constant dense<0.000000e+00> : vector<32x256xf32>
    %3 = tpu.matmul %0, %2, %cst {dimension_numbers = #tpu.dot_dimension_numbers<[1], [0], [0], [1], [0, 0, 1, 1], [], []>} : vector<32x4xf32>, vector<4x256xf32>, vector<32x256xf32> -> vector<32x256xf32>
    %c0_4 = arith.constant 0 : index
    %c0_5 = arith.constant 0 : index
    %4 = vector.load %arg4[%c0_4, %c0_5] : memref<32x1xf32, #tpu.memory_space<vmem>>, vector<32x1xf32>
    %5 = vector.broadcast %4 : vector<32x1xf32> to vector<32x256xf32>
    %6 = arith.addf %3, %5 : vector<32x256xf32>
    %cst_6 = arith.constant 0.000000e+00 : f32
    %7 = vector.broadcast %cst_6 : f32 to vector<32x256xf32>
    %8 = arith.maximumf %6, %7 : vector<32x256xf32>
    %cst_7 = arith.constant dense<0.000000e+00> : vector<32xf32>
    %9 = vector.multi_reduction <add>, %8, %cst_7 [1] : vector<32x256xf32> to vector<32xf32>
    %10 = vector.shape_cast %9 : vector<32xf32> to vector<32x1xf32>
    %cst_8 = arith.constant 3.906250e-03 : f32
    %11 = vector.broadcast %cst_8 : f32 to vector<32x1xf32>
    %12 = arith.mulf %10, %11 : vector<32x1xf32>
    %13 = vector.broadcast %12 : vector<32x1xf32> to vector<32x256xf32>
    %14 = arith.subf %8, %13 : vector<32x256xf32>
    %15 = arith.mulf %14, %14 : vector<32x256xf32>
    %cst_9 = arith.constant dense<0.000000e+00> : vector<32xf32>
    %16 = vector.multi_reduction <add>, %15, %cst_9 [1] : vector<32x256xf32> to vector<32xf32>
    %17 = vector.shape_cast %16 : vector<32xf32> to vector<32x1xf32>
    %18 = vector.shape_cast %10 : vector<32x1xf32> to vector<1x1x32x1xf32>
    %c0_10 = arith.constant 0 : index
    %c0_11 = arith.constant 0 : index
    %c0_12 = arith.constant 0 : index
    %c0_13 = arith.constant 0 : index
    %19 = vector.load %arg5[%c0_10, %c0_11, %c0_12, %c0_13] : memref<1x1x32x1xf32, #tpu.memory_space<vmem>>, vector<1x1x32x1xf32>
    tpu.vector_store %arg5[%c0_10, %c0_11, %c0_12, %c0_13], %18 {strides = array<i32>} : memref<1x1x32x1xf32, #tpu.memory_space<vmem>>, vector<1x1x32x1xf32>,
    %20 = vector.shape_cast %17 : vector<32x1xf32> to vector<1x1x32x1xf32>
    %c0_14 = arith.constant 0 : index
    %c0_15 = arith.constant 0 : index
    %c0_16 = arith.constant 0 : index
    %c0_17 = arith.constant 0 : index
    %21 = vector.load %arg6[%c0_14, %c0_15, %c0_16, %c0_17] : memref<1x1x32x1xf32, #tpu.memory_space<vmem>>, vector<1x1x32x1xf32>
    tpu.vector_store %arg6[%c0_14, %c0_15, %c0_16, %c0_17], %20 {strides = array<i32>} : memref<1x1x32x1xf32, #tpu.memory_space<vmem>>, vector<1x1x32x1xf32>,
    return
  }
  func.func @transform_0(%arg0: i32, %arg1: i32) -> (i32, i32, i32) {
    %c0_i32 = arith.constant 0 : i32
    %c0_i32_0 = arith.constant 0 : i32
    return %arg0, %c0_i32, %arg1 : i32, i32, i32
  }
  func.func @transform_1(%arg0: i32, %arg1: i32) -> (i32, i32) {
    %c0_i32 = arith.constant 0 : i32
    %c0_i32_0 = arith.constant 0 : i32
    %c0_i32_1 = arith.constant 0 : i32
    return %c0_i32, %c0_i32_0 : i32, i32
  }
  func.func @transform_2(%arg0: i32, %arg1: i32) -> (i32, i32) {
    %c0_i32 = arith.constant 0 : i32
    %c0_i32_0 = arith.constant 0 : i32
    %c0_i32_1 = arith.constant 0 : i32
    return %c0_i32, %c0_i32_0 : i32, i32
  }
  func.func @transform_3(%arg0: i32, %arg1: i32) -> (i32, i32, i32, i32) {
    %c0_i32 = arith.constant 0 : i32
    %c0_i32_0 = arith.constant 0 : i32
    %c0_i32_1 = arith.constant 0 : i32
    return %arg0, %arg1, %c0_i32, %c0_i32_0 : i32, i32, i32, i32
  }
  func.func @transform_4(%arg0: i32, %arg1: i32) -> (i32, i32, i32, i32) {
    %c0_i32 = arith.constant 0 : i32
    %c0_i32_0 = arith.constant 0 : i32
    %c0_i32_1 = arith.constant 0 : i32
    return %arg0, %arg1, %c0_i32, %c0_i32_0 : i32, i32, i32, i32
  }
}

</mosaic_0001>

<llo_original>
// kernel: tpu_custom_call.1
$region0: #{tpu_custom_call.1}
  #allocation0 [shape = 'u32[]', space=smem, size = 0x4, offset = 0x4, fixed_abs, tag = 'smem constant byte address 0x4 - core index']
  #allocation1 [shape = 'u32[72,128]{1,0:T(1,128)}', space=vmem, size = 0x9000, scoped, tag = 'internal scratch']
  %s0 = inlined_call_operand.vmem [shape: f32[2,4,256], index: 0, kind: input, shape index: {}]
  %s1 = inlined_call_operand.vmem [shape: f32[32,4], index: 1, kind: input, shape index: {}]
  %s2 = inlined_call_operand.vmem [shape: f32[32,1], index: 2, kind: input, shape index: {}]
  %s3 = inlined_call_operand.vmem [shape: f32[2,1,32,1], index: 3, kind: output, shape index: {0}]
  %s4 = inlined_call_operand.vmem [shape: f32[2,1,32,1], index: 4, kind: output, shape index: {1}]
  %5 = xla_tuple %s3, %s4
  %s6 = sld [smem:[#allocation0]]
  $region53: #{tpu_custom_call.1} parent=0
    _
  %s8 = ssub.s32 1, %s6
  %s9 = scalar_select 0, %s8, %s6
  loop: start=0, step=1, limit=4
  $region2: #{tpu_custom_call.1} parent=0 // loop_pre_header
    _
  $region3: #{tpu_custom_call.1} parent=0 // loop_header
    %s11 = sphi 0, %s15
    %p12 = scmp.ge.s32.totalorder %s11, 4
    %s18 = sphi 0, %s30
    %s19 = sphi 0, %s26
    %s20 = sphi 0, %s18
    %s21 = sphi 0, %s19
    %s22 = sphi 0, %s20
    %s23 = sphi 0, %s21
    %s35 = sphi 0, %s37
    %s38 = sphi 0, %s35
    %s39 = sphi 0, %s38
    %s55 = sphi 0, %s39
    %s59 = sphi 0, %s59
    %s61 = sphi 0, %s59
    %s62 = sphi 0, %s61
    %s76 = sphi 0, %s62
    %s80 = sphi 0, %s80
    %s82 = sphi 0, %s80
    %s83 = sphi 0, %s82
    %s97 = sphi 0, %s83
    %s105 = sphi 0, %s107
    %s108 = sphi 0, %s105
    %s109 = sphi 0, %s108
    %s125 = sphi 0, %s109
    %s133 = sphi 0, %s135
    %s136 = sphi 0, %s133
    %s137 = sphi 0, %s136
    %s153 = sphi 0, %s137
  $region4: #{tpu_custom_call.1} parent=0 // loop_header_branch
    %14 = sbr.rel (%p12) target = $region8
  $region5: #{tpu_custom_call.1} parent=0 // loop_body
    %s16 = ssub.s32 %s11, 1
    %s17 = ssub.s32 %s11, 2
    %s24 = sadd.s32 1, %s19
    %p25 = scmp.ge.s32.totalorder %s24, 1
    %s26 = scalar_select %p25, 0, %s24
    %s27 = sadd.s32 1, %s18
    %s28 = scalar_select %p25, %s27, %s18
    %p29 = scmp.ge.s32.totalorder %s28, 2
    %s30 = scalar_select %p29, 0, %s28
    %s31 = ssub.s32 %s18, %s30
    %s32 = ssub.s32 %s19, %s26
    %s33 = sor.u32 %s31, %s32
    %p34 = scmp.eq.s32.totalorder %s33, 0
    %s36 = sadd.s32 %s35, 1
    %s37 = scalar_select %p34, %s35, %s36
    %p40 = pneg %p34
    %p41 = scmp.eq.s32.totalorder %s11, 1
    %p42 = por %p40, %p41
    %p43 = scmp.ne.s32.totalorder %s35, %s38
    %p44 = scmp.eq.s32.totalorder %s11, 0
    %p45 = por %p43, %p44
    %p46 = scmp.ne.s32.totalorder %s35, %s38
    %p47 = scmp.eq.s32.totalorder %s16, 1
    %p48 = por %p46, %p47
    %p49 = scmp.ne.s32.totalorder %s38, %s39
    %p50 = scmp.eq.s32.totalorder %s16, 0
    %p51 = por %p49, %p50
    %p52 = scmp.ne.s32.totalorder %s38, %s39
    %p53 = scmp.eq.s32.totalorder %s17, 1
    %p54 = por %p52, %p53
    %p56 = scmp.ne.s32.totalorder %s39, %s55
    %p57 = scmp.eq.s32.totalorder %s17, 0
    %p58 = por %p56, %p57
    %s60 = sadd.s32 %s59, 1
    %p63 = scmp.eq.s32.totalorder %s11, 1
    %p64 = scmp.ne.s32.totalorder %s59, %s61
    %p65 = scmp.eq.s32.totalorder %s11, 0
    %p66 = por %p64, %p65
    %p67 = scmp.ne.s32.totalorder %s59, %s61
    %p68 = scmp.eq.s32.totalorder %s16, 1
    %p69 = por %p67, %p68
    %p70 = scmp.ne.s32.totalorder %s61, %s62
    %p71 = scmp.eq.s32.totalorder %s16, 0
    %p72 = por %p70, %p71
    %p73 = scmp.ne.s32.totalorder %s61, %s62
    %p74 = scmp.eq.s32.totalorder %s17, 1
    %p75 = por %p73, %p74
    %p77 = scmp.ne.s32.totalorder %s62, %s76
    %p78 = scmp.eq.s32.totalorder %s17, 0
    %p79 = por %p77, %p78
    %s81 = sadd.s32 %s80, 1
    %p84 = scmp.eq.s32.totalorder %s11, 1
    %p85 = scmp.ne.s32.totalorder %s80, %s82
    %p86 = scmp.eq.s32.totalorder %s11, 0
    %p87 = por %p85, %p86
    %p88 = scmp.ne.s32.totalorder %s80, %s82
    %p89 = scmp.eq.s32.totalorder %s16, 1
    %p90 = por %p88, %p89
    %p91 = scmp.ne.s32.totalorder %s82, %s83
    %p92 = scmp.eq.s32.totalorder %s16, 0
    %p93 = por %p91, %p92
    %p94 = scmp.ne.s32.totalorder %s82, %s83
    %p95 = scmp.eq.s32.totalorder %s17, 1
    %p96 = por %p94, %p95
    %p98 = scmp.ne.s32.totalorder %s83, %s97
    %p99 = scmp.eq.s32.totalorder %s17, 0
    %p100 = por %p98, %p99
    %s101 = ssub.s32 %s18, %s30
    %s102 = ssub.s32 %s19, %s26
    %s103 = sor.u32 %s101, %s102
    %p104 = scmp.eq.s32.totalorder %s103, 0
    %s106 = sadd.s32 %s105, 1
    %s107 = scalar_select %p104, %s105, %s106
    %p110 = pneg %p104
    %p111 = scmp.eq.s32.totalorder %s11, 1
    %p112 = por %p110, %p111
    %p113 = scmp.ne.s32.totalorder %s105, %s108
    %p114 = scmp.eq.s32.totalorder %s11, 0
    %p115 = por %p113, %p114
    %p116 = scmp.ne.s32.totalorder %s105, %s108
    %p117 = scmp.eq.s32.totalorder %s16, 1
    %p118 = por %p116, %p117
    %p119 = scmp.ne.s32.totalorder %s108, %s109
    %p120 = scmp.eq.s32.totalorder %s16, 0
    %p121 = por %p119, %p120
    %p122 = scmp.ne.s32.totalorder %s108, %s109
    %p123 = scmp.eq.s32.totalorder %s17, 1
    %p124 = por %p122, %p123
    %p126 = scmp.ne.s32.totalorder %s109, %s125
    %p127 = scmp.eq.s32.totalorder %s17, 0
    %p128 = por %p126, %p127
    %s129 = ssub.s32 %s18, %s30
    %s130 = ssub.s32 %s19, %s26
    %s131 = sor.u32 %s129, %s130
    %p132 = scmp.eq.s32.totalorder %s131, 0
    %s134 = sadd.s32 %s133, 1
    %s135 = scalar_select %p132, %s133, %s134
    %p138 = pneg %p132
    %p139 = scmp.eq.s32.totalorder %s11, 1
    %p140 = por %p138, %p139
    %p141 = scmp.ne.s32.totalorder %s133, %s136
    %p142 = scmp.eq.s32.totalorder %s11, 0
    %p143 = por %p141, %p142
    %p144 = scmp.ne.s32.totalorder %s133, %s136
    %p145 = scmp.eq.s32.totalorder %s16, 1
    %p146 = por %p144, %p145
    %p147 = scmp.ne.s32.totalorder %s136, %s137
    %p148 = scmp.eq.s32.totalorder %s16, 0
    %p149 = por %p147, %p148
    %p150 = scmp.ne.s32.totalorder %s136, %s137
    %p151 = scmp.eq.s32.totalorder %s17, 1
    %p152 = por %p150, %p151
    %p154 = scmp.ne.s32.totalorder %s137, %s153
    %p155 = scmp.eq.s32.totalorder %s17, 0
    %p156 = por %p154, %p155
    %p157 = scmp.le.s32.totalorder 1, %s11
    %p158 = scmp.lt.s32.totalorder %s11, 3
    %p159 = pnand %p157, %p158
    %p160 = pneg %p159
    // Predicated region
    $region9: #{tpu_custom_call.1} parent=5 // pred_check
      _
    $region10: #{tpu_custom_call.1} parent=5 // pred_check_branch
      %162 = sbr.rel (%p159) target = $region12
    $region11: #{tpu_custom_call.1} parent=5 // pred_region
      %s163 = ssub.s32 %s11, 1
      // Predicated region
      $region13: #{tpu_custom_call.1} parent=11 // pred_check
        %p164 = pneg %p72
      $region14: #{tpu_custom_call.1} parent=11 // pred_check_branch
        %166 = sbr.rel (%p164) target = $region16
      $region15: #{tpu_custom_call.1} parent=11 // pred_region
        _
      $region16: #{tpu_custom_call.1} parent=11 // pred_fallthru
        _
      // Predicated region
      $region17: #{tpu_custom_call.1} parent=11 // pred_check
        %p167 = pneg %p93
      $region18: #{tpu_custom_call.1} parent=11 // pred_check_branch
        %169 = sbr.rel (%p167) target = $region20
      $region19: #{tpu_custom_call.1} parent=11 // pred_region
        _
      $region20: #{tpu_custom_call.1} parent=11 // pred_fallthru
        _
    $region12: #{tpu_custom_call.1} parent=5 // pred_fallthru
      _
    %p170 = scmp.lt.s32.totalorder %s11, 2
    // Predicated region
    $region21: #{tpu_custom_call.1} parent=5 // pred_check
      %p171 = pneg %p170
    $region22: #{tpu_custom_call.1} parent=5 // pred_check_branch
      %173 = sbr.rel (%p171) target = $region24
    $region23: #{tpu_custom_call.1} parent=5 // pred_region
      // Predicated region
      $region25: #{tpu_custom_call.1} parent=23 // pred_check
        %p174 = pneg %p45
      $region26: #{tpu_custom_call.1} parent=23 // pred_check_branch
        %176 = sbr.rel (%p174) target = $region28
      $region27: #{tpu_custom_call.1} parent=23 // pred_region
        %s177 = smul.u32 2, %s19
        %p178 = scmp.lt.s32.totalorder %s18, 1
        %s179 = scalar_select %p178, %s18, 1
        %p180 = scmp.lt.s32.totalorder %s177, 1
        %s181 = scalar_select %p180, %s177, 1
        %s182 = smul.addr %s179, 2
        %s183 = sadd.s32 %s181, %s182
        %s184 = smul.addr %s183, 4
        %s185 = scalar_lea.vmem %s0, %s184
        %s186 = smul.u32 2, %s19
      $region28: #{tpu_custom_call.1} parent=23 // pred_fallthru
        _
    $region24: #{tpu_custom_call.1} parent=5 // pred_fallthru
      _
    %p187 = scmp.le.s32.totalorder 1, %s11
    %p188 = scmp.lt.s32.totalorder %s11, 3
    %p189 = pnand %p187, %p188
    %p190 = pneg %p189
    // Predicated region
    $region29: #{tpu_custom_call.1} parent=5 // pred_check
      _
    $region30: #{tpu_custom_call.1} parent=5 // pred_check_branch
      %192 = sbr.rel (%p189) target = $region32
    $region31: #{tpu_custom_call.1} parent=5 // pred_region
      %s193 = ssub.s32 %s11, 1
      %s194 = smul.u32 2, %s21
      %p195 = scmp.lt.s32.totalorder %s20, 1
      %s196 = scalar_select %p195, %s20, 1
      %p197 = scmp.lt.s32.totalorder %s194, 1
      %s198 = scalar_select %p197, %s194, 1
      %s199 = smul.addr %s196, 2
      %s200 = sadd.s32 %s198, %s199
      %s201 = smul.addr %s200, 4
      %s202 = scalar_lea.vmem %s0, %s201
      %p203 = pneg %p51
      %p204 = pneg %p48
      %p205 = pneg %p72
      %p206 = pneg %p69
      %p207 = pneg %p93
      %p208 = pneg %p90
      %p209 = pneg %p121
      %p210 = pneg %p118
      %p211 = scmp.lt.s32.totalorder %s20, 1
      %s212 = scalar_select %p211, %s20, 1
      %p213 = scmp.lt.s32.totalorder %s21, 0
      %s214 = scalar_select %p213, %s21, 0
      %s215 = smul.addr %s214, 4
      %s216 = smul.addr %s212, 4
      %s217 = sadd.s32 %s215, %s216
      %s218 = smul.addr %s217, 8
      %s219 = scalar_lea.vmem %s3, %s218
      %p220 = pneg %p149
      %p221 = pneg %p146
      %p222 = scmp.lt.s32.totalorder %s20, 1
      %s223 = scalar_select %p222, %s20, 1
      %p224 = scmp.lt.s32.totalorder %s21, 0
      %s225 = scalar_select %p224, %s21, 0
      %s226 = smul.addr %s225, 4
      %s227 = smul.addr %s223, 4
      %s228 = sadd.s32 %s226, %s227
      %s229 = smul.addr %s228, 8
      %s230 = scalar_lea.vmem %s4, %s229
      %s231 = smul.u32 2, %s21
      %p232 = scmp.lt.s32.totalorder %s20, 1
      %s233 = scalar_select %p232, %s20, 1
      %p234 = scmp.lt.s32.totalorder %s231, 1
      %s235 = scalar_select %p234, %s231, 1
      %s236 = smul.addr %s233, 2
      %s237 = sadd.s32 %s235, %s236
      %s238 = smul.addr %s237, 4
      %s239 = scalar_lea.vmem %s0, %s238
      %s240 = smul.u32 2, %s21
      %p241 = scmp.lt.s32.totalorder %s20, 1
      %s242 = scalar_select %p241, %s20, 1
      %p243 = scmp.lt.s32.totalorder %s21, 0
      %s244 = scalar_select %p243, %s21, 0
      %s245 = smul.addr %s244, 4
      %s246 = smul.addr %s242, 4
      %s247 = sadd.s32 %s245, %s246
      %s248 = smul.addr %s247, 8
      %s249 = scalar_lea.vmem %s3, %s248
      %p250 = scmp.lt.s32.totalorder %s20, 1
      %s251 = scalar_select %p250, %s20, 1
      %p252 = scmp.lt.s32.totalorder %s21, 0
      %s253 = scalar_select %p252, %s21, 0
      %s254 = smul.addr %s253, 4
      %s255 = smul.addr %s251, 4
      %s256 = sadd.s32 %s254, %s255
      %s257 = smul.addr %s256, 8
      %s258 = scalar_lea.vmem %s4, %s257
      %v259 = vld [vmem:[%s1] sm:$0xff]
      %v260 = vld [vmem:[%s1 + $0x8] sm:$0xff]
      %v261 = vld [vmem:[%s1 + $0x10] sm:$0xff]
      %v262 = vld [vmem:[%s1 + $0x18] sm:$0xff]
      %v263 = vld [vmem:[%s239] sm:$0xff]
      %v264 = vld [vmem:[%s2] sm:$0xff]
      %v265 = vld [vmem:[%s2 + $0x8] sm:$0xff]
      %v266 = vld [vmem:[%s2 + $0x10] sm:$0xff]
      %v267 = vld [vmem:[%s2 + $0x18] sm:$0xff]
      %269 = vset.pattern.permute.xlu0 0
      %270 = vperm.xlu0 %269, %v264
      %v271 = vpop.permute.xlu0 %270
      %274 = vset.pattern.permute.xlu0 0
      %275 = vperm.xlu0 %274, %v265
      %v276 = vpop.permute.xlu0 %275
      %279 = vset.pattern.permute.xlu0 0
      %280 = vperm.xlu0 %279, %v266
      %v281 = vpop.permute.xlu0 %280
      %284 = vset.pattern.permute.xlu0 0
      %285 = vperm.xlu0 %284, %v267
      %v286 = vpop.permute.xlu0 %285
      %289 = vst [vmem:[#allocation1] ss:$2 sm:$0xff] %v263
      %v290 = vld.sshfl [vmem:[#allocation1] sm:$0xff pattern:$0x75316420]
      %v291 = vld.sshfl [vmem:[#allocation1 + $0x8] sm:$0xff pattern:$0x75316420]
      %vm292 = vcmask 31744
      %v294 = vsel %vm292, %v259, 0
      %v297 = vsel %vm292, %v260, 0
      %v300 = vsel %vm292, %v261, 0
      %v303 = vsel %vm292, %v262, 0
      %vm305 = vcmask 1043456
      %v306 = vsel %vm305, %v290, 0
      %v308 = vsel %vm305, %v291, 0
      %310 = vmatpush.msra.mxu0 0.0
      %311 = vmatpush.msra.mxu0 0.0
      %312 = vmatpush.msra.mxu0 0.0
      %313 = vmatpush.msra.mxu0 0.0
      %314 = vmatpush.msra.mxu0 0.0
      %315 = vmatpush.msra.mxu0 0.0
      %316 = vmatpush.msra.mxu0 0.0
      %317 = vmatpush.msra.mxu0 0.0
      %318 = vmatpush.msra.mxu0 0.0
      %319 = vmatpush.msra.mxu0 0.0
      %320 = vmatpush.msra.mxu0 0.0
      %321 = vmatpush.msra.mxu0 0.0
      %322 = vmatpush.msra.mxu0 0.0
      %323 = vmatpush.msra.mxu0 0.0
      %324 = vmatpush.msra.mxu0 0.0
      %325 = vmatpush.msra.mxu0 %v306
      %326 = vmatmul.f32.gmra.mxu0 %v294
      %v327 = vpop.f32.mrf.mxu0
      %v328 = vadd.f32 %v271, %v327
      %329 = vmatmul.f32.gmra.mxu0 %v297
      %v330 = vpop.f32.mrf.mxu0
      %v331 = vadd.f32 %v276, %v330
      %332 = vmatmul.f32.gmra.mxu0 %v300
      %v333 = vpop.f32.mrf.mxu0
      %v334 = vadd.f32 %v281, %v333
      %335 = vmatmul.f32.gmra.mxu0 %v303
      %v336 = vpop.f32.mrf.mxu0
      %v337 = vadd.f32 %v286, %v336
      %338 = vdwg.mxu0
      %339 = vmatpush.msra.mxu0 0.0
      %340 = vmatpush.msra.mxu0 0.0
      %341 = vmatpush.msra.mxu0 0.0
      %342 = vmatpush.msra.mxu0 0.0
      %343 = vmatpush.msra.mxu0 0.0
      %344 = vmatpush.msra.mxu0 0.0
      %345 = vmatpush.msra.mxu0 0.0
      %346 = vmatpush.msra.mxu0 0.0
      %347 = vmatpush.msra.mxu0 0.0
      %348 = vmatpush.msra.mxu0 0.0
      %349 = vmatpush.msra.mxu0 0.0
      %350 = vmatpush.msra.mxu0 0.0
      %351 = vmatpush.msra.mxu0 0.0
      %352 = vmatpush.msra.mxu0 0.0
      %353 = vmatpush.msra.mxu0 0.0
      %354 = vmatpush.msra.mxu0 %v308
      %355 = vmatmul.f32.gmra.mxu0 %v294
      %v356 = vpop.f32.mrf.mxu0
      %v357 = vadd.f32 %v271, %v356
      %358 = vmatmul.f32.gmra.mxu0 %v297
      %v359 = vpop.f32.mrf.mxu0
      %v360 = vadd.f32 %v276, %v359
      %361 = vmatmul.f32.gmra.mxu0 %v300
      %v362 = vpop.f32.mrf.mxu0
      %v363 = vadd.f32 %v281, %v362
      %364 = vmatmul.f32.gmra.mxu0 %v303
      %v365 = vpop.f32.mrf.mxu0
      %v366 = vadd.f32 %v286, %v365
      %367 = vdwg.mxu0
      %v368 = vmax.f32 %v328, 0.0
      %v369 = vmax.f32 %v357, 0.0
      %v370 = vmax.f32 %v331, 0.0
      %v371 = vmax.f32 %v360, 0.0
      %v372 = vmax.f32 %v334, 0.0
      %v373 = vmax.f32 %v363, 0.0
      %v374 = vmax.f32 %v337, 0.0
      %v375 = vmax.f32 %v366, 0.0
      %v376 = vadd.f32 %v368, %v369
      %377 = vadd.xlane.f32.xlu0 %v376
      %v378 = vpop.xlane.xlu0 %377
      %v379 = vadd.f32 %v370, %v371
      %380 = vadd.xlane.f32.xlu0 %v379
      %v381 = vpop.xlane.xlu0 %380
      %v382 = vadd.f32 %v372, %v373
      %383 = vadd.xlane.f32.xlu0 %v382
      %v384 = vpop.xlane.xlu0 %383
      %v385 = vadd.f32 %v374, %v375
      %386 = vadd.xlane.f32.xlu0 %v385
      %v387 = vpop.xlane.xlu0 %386
      %v388 = vmul.f32 %v378, 0.00390625
      %v389 = vmul.f32 %v381, 0.00390625
      %v390 = vmul.f32 %v384, 0.00390625
      %v391 = vmul.f32 %v387, 0.00390625
      %v392 = vsub.f32 %v368, %v388
      %v393 = vsub.f32 %v369, %v388
      %v394 = vsub.f32 %v370, %v389
      %v395 = vsub.f32 %v371, %v389
      %v396 = vsub.f32 %v372, %v390
      %v397 = vsub.f32 %v373, %v390
      %v398 = vsub.f32 %v374, %v391
      %v399 = vsub.f32 %v375, %v391
      %v400 = vmul.f32 %v392, %v392
      %v401 = vmul.f32 %v393, %v393
      %v402 = vmul.f32 %v394, %v394
      %v403 = vmul.f32 %v395, %v395
      %v404 = vmul.f32 %v396, %v396
      %v405 = vmul.f32 %v397, %v397
      %v406 = vmul.f32 %v398, %v398
      %v407 = vmul.f32 %v399, %v399
      %v408 = vadd.f32 %v400, %v401
      %409 = vadd.xlane.f32.xlu0 %v408
      %v410 = vpop.xlane.xlu0 %409
      %v411 = vadd.f32 %v402, %v403
      %412 = vadd.xlane.f32.xlu0 %v411
      %v413 = vpop.xlane.xlu0 %412
      %v414 = vadd.f32 %v404, %v405
      %415 = vadd.xlane.f32.xlu0 %v414
      %v416 = vpop.xlane.xlu0 %415
      %v417 = vadd.f32 %v406, %v407
      %418 = vadd.xlane.f32.xlu0 %v417
      %v419 = vpop.xlane.xlu0 %418
      %vm420 = vcmask 7168
      %421 = vst.msk [vmem:[%s249] sm:$0xff] %vm420, %v378
      %422 = vst.msk [vmem:[%s249 + $0x8] sm:$0xff] %vm420, %v381
      %423 = vst.msk [vmem:[%s249 + $0x10] sm:$0xff] %vm420, %v384
      %424 = vst.msk [vmem:[%s249 + $0x18] sm:$0xff] %vm420, %v387
      %425 = vst.msk [vmem:[%s258] sm:$0xff] %vm420, %v410
      %426 = vst.msk [vmem:[%s258 + $0x8] sm:$0xff] %vm420, %v413
      %427 = vst.msk [vmem:[%s258 + $0x10] sm:$0xff] %vm420, %v416
      %428 = vst.msk [vmem:[%s258 + $0x18] sm:$0xff] %vm420, %v419
      %p429 = scmp.lt.s32.totalorder %s20, 1
      %s430 = scalar_select %p429, %s20, 1
      %p431 = scmp.lt.s32.totalorder %s21, 0
      %s432 = scalar_select %p431, %s21, 0
      %s433 = smul.addr %s432, 4
      %s434 = smul.addr %s430, 4
      %s435 = sadd.s32 %s433, %s434
      %s436 = smul.addr %s435, 8
      %s437 = scalar_lea.vmem %s3, %s436
      %p438 = scmp.lt.s32.totalorder %s20, 1
      %s439 = scalar_select %p438, %s20, 1
      %p440 = scmp.lt.s32.totalorder %s21, 0
      %s441 = scalar_select %p440, %s21, 0
      %s442 = smul.addr %s441, 4
      %s443 = smul.addr %s439, 4
      %s444 = sadd.s32 %s442, %s443
      %s445 = smul.addr %s444, 8
      %s446 = scalar_lea.vmem %s4, %s445
      // Predicated region
      $region33: #{tpu_custom_call.1} parent=31 // pred_check
        %p447 = pneg %p118
      $region34: #{tpu_custom_call.1} parent=31 // pred_check_branch
        %449 = sbr.rel (%p447) target = $region36
      $region35: #{tpu_custom_call.1} parent=31 // pred_region
        _
      $region36: #{tpu_custom_call.1} parent=31 // pred_fallthru
        _
      // Predicated region
      $region37: #{tpu_custom_call.1} parent=31 // pred_check
        %p450 = pneg %p146
      $region38: #{tpu_custom_call.1} parent=31 // pred_check_branch
        %452 = sbr.rel (%p450) target = $region40
      $region39: #{tpu_custom_call.1} parent=31 // pred_region
        _
      $region40: #{tpu_custom_call.1} parent=31 // pred_fallthru
        _
    $region32: #{tpu_custom_call.1} parent=5 // pred_fallthru
      _
    %p453 = scmp.le.s32.totalorder 2, %s11
    // Predicated region
    $region41: #{tpu_custom_call.1} parent=5 // pred_check
      %p454 = pneg %p453
    $region42: #{tpu_custom_call.1} parent=5 // pred_check_branch
      %456 = sbr.rel (%p454) target = $region44
    $region43: #{tpu_custom_call.1} parent=5 // pred_region
      %s457 = ssub.s32 %s11, 2
      // Predicated region
      $region45: #{tpu_custom_call.1} parent=43 // pred_check
        %p458 = pneg %p124
      $region46: #{tpu_custom_call.1} parent=43 // pred_check_branch
        %460 = sbr.rel (%p458) target = $region48
      $region47: #{tpu_custom_call.1} parent=43 // pred_region
        %p461 = scmp.lt.s32.totalorder %s22, 1
        %s462 = scalar_select %p461, %s22, 1
        %p463 = scmp.lt.s32.totalorder %s23, 0
        %s464 = scalar_select %p463, %s23, 0
        %s465 = smul.addr %s464, 4
        %s466 = smul.addr %s462, 4
        %s467 = sadd.s32 %s465, %s466
        %s468 = smul.addr %s467, 8
        %s469 = scalar_lea.vmem %s3, %s468
      $region48: #{tpu_custom_call.1} parent=43 // pred_fallthru
        _
      // Predicated region
      $region49: #{tpu_custom_call.1} parent=43 // pred_check
        %p470 = pneg %p152
      $region50: #{tpu_custom_call.1} parent=43 // pred_check_branch
        %472 = sbr.rel (%p470) target = $region52
      $region51: #{tpu_custom_call.1} parent=43 // pred_region
        %p473 = scmp.lt.s32.totalorder %s22, 1
        %s474 = scalar_select %p473, %s22, 1
        %p475 = scmp.lt.s32.totalorder %s23, 0
        %s476 = scalar_select %p475, %s23, 0
        %s477 = smul.addr %s476, 4
        %s478 = smul.addr %s474, 4
        %s479 = sadd.s32 %s477, %s478
        %s480 = smul.addr %s479, 8
        %s481 = scalar_lea.vmem %s4, %s480
      $region52: #{tpu_custom_call.1} parent=43 // pred_fallthru
        _
    $region44: #{tpu_custom_call.1} parent=5 // pred_fallthru
      _
  $region6: #{tpu_custom_call.1} parent=0 // loop_footer
    %s15 = sadd.s32 1, %s11
  $region7: #{tpu_custom_call.1} parent=0 // loop_footer_branch
    %10 = sbr.rel target = $region3
  $region8: #{tpu_custom_call.1} parent=0 // loop_exit
    _

</llo_original>
